<compile_context>
chip_gen: v5e
topology: v5e:2x2
jax: 0.10.0
libtpu: 0.0.40
codegen_flags: <defaults>
</compile_context>

<pallas_src>
import functools

import jax
import jax.numpy as jnp
from jax.experimental import pallas as pl
from jax.experimental.pallas import tpu as pltpu


_TARGET_BLOCK_BYTES = 4 * 1024 * 1024   # ~4 MiB per image block (per review)
_VMEM_LIMIT_BYTES = 48 * 1024 * 1024    # raise scoped VMEM; < 64 MiB v7x physical


def _normalize_row_stats_kernel(mean_ref, inv_ref, img_ref, out_ref, *, rt):
    """img/out: (rt, lt) tiles; mean/inv: resident (R_pad, 1) f32 columns."""
    if mean_ref.shape[0] == rt:
        # Single row block: the whole resident column is this block's stats.
        m = mean_ref[...]
        s = inv_ref[...]
    else:
        # rt is 8-aligned whenever there is more than one row block, so the
        # dynamic sublane offset is always a multiple of 8 and in-bounds
        # (columns are padded to row_blocks * rt rows in the wrapper).
        r0 = pl.multiple_of(pl.program_id(0) * rt, 8)
        m = mean_ref[pl.ds(r0, rt), :]
        s = inv_ref[pl.ds(r0, rt), :]
    x = img_ref[...].astype(jnp.float32)
    out_ref[...] = ((x - m) * s).astype(out_ref.dtype)


def _normalize_lane_stats_kernel(mean_ref, inv_ref, img_ref, out_ref):
    """img/out: (rt, lt) tiles; mean/inv: (1, lt) f32 lane vectors."""
    x = img_ref[...].astype(jnp.float32)
    out_ref[...] = ((x - mean_ref[...]) * inv_ref[...]).astype(out_ref.dtype)


def _choose_tiles(R, T, itemsize):
    """Pick (row_tile, lane_tile) for a (R, T) streaming elementwise kernel.

    Lane tile: whole contiguous row when an 8-sublane slab of full rows fits
    the block budget, else the largest 128-aligned tile that does.  No exact
    divisibility requirement -- ragged edges are masked by Pallas.
    Row tile: fill the block budget, 8-sublane aligned; keep >=2 row blocks
    when the lane axis is a single block so both v7x TensorCores get work.
    """
    if T <= 128 or 8 * T * itemsize <= _TARGET_BLOCK_BYTES:
        lt = T
    else:
        lt = max(128, (_TARGET_BLOCK_BYTES // (8 * itemsize)) // 128 * 128)
        lt = min(lt, T)

    rows_for_target = max(1, _TARGET_BLOCK_BYTES // (lt * itemsize))
    if R <= rows_for_target:
        rt = R
    else:
        rt = max(8, (rows_for_target // 8) * 8)

    # Megacore (v7x, 2 TCs): if the lane axis has only one block, split the
    # row axis into >=2 parallel blocks for non-tiny inputs.
    if lt == T and rt == R and R >= 16:
        half = (R + 1) // 2
        rt = ((half + 7) // 8) * 8
    return rt, lt


def normalization(img, mean, std):
    """(img - mean.view(-1,1,1)) / std.view(-1,1,1) for an NCHW image."""
    B, C, H, W = img.shape
    assert mean.shape == (C,) and std.shape == (C,)

    itemsize = jnp.dtype(img.dtype).itemsize
    # Stats stay in f32; kernel computes in f32 and casts on store (free for a
    # memory-bound kernel, matches PyTorch's division numerics more closely).
    mean_f32 = mean.astype(jnp.float32)
    inv_f32 = 1.0 / std.astype(jnp.float32)

    hw = H * W
    compiler_params = pltpu.CompilerParams(
        dimension_semantics=("parallel", "parallel"),
        vmem_limit_bytes=_VMEM_LIMIT_BYTES,
    )

    if hw >= 128 and hw % 128 == 0:
        # ---- Path 1: lane-dense rows of length H*W, per-(B*C)-row stats ----
        R, T = B * C, hw
        x2 = img.reshape(R, T)                      # contiguous, free
        rt, lt = _choose_tiles(R, T, itemsize)
        grid = (pl.cdiv(R, rt), pl.cdiv(T, lt))     # lane axis innermost

        # Resident per-row stats columns, padded so in-kernel slices stay
        # in-bounds for the (masked) edge row block.
        R_pad = grid[0] * rt
        mean_col = jnp.tile(mean_f32, B).reshape(R, 1)
        inv_col = jnp.tile(inv_f32, B).reshape(R, 1)
        if R_pad != R:
            mean_col = jnp.pad(mean_col, ((0, R_pad - R), (0, 0)))
            inv_col = jnp.pad(inv_col, ((0, R_pad - R), (0, 0)))

        out2 = pl.pallas_call(
            functools.partial(_normalize_row_stats_kernel, rt=rt),
            out_shape=jax.ShapeDtypeStruct((R, T), img.dtype),
            grid=grid,
            in_specs=[
                pl.BlockSpec((R_pad, 1), lambda r, l: (0, 0)),  # resident mean
                pl.BlockSpec((R_pad, 1), lambda r, l: (0, 0)),  # resident 1/std
                pl.BlockSpec((rt, lt), lambda r, l: (r, l)),    # image tile
            ],
            out_specs=pl.BlockSpec((rt, lt), lambda r, l: (r, l)),
            compiler_params=compiler_params,
        )(mean_col, inv_col, x2)
        return out2.reshape(B, C, H, W)

    # ---- Path 2: H*W not 128-aligned -> fold channels into the lane axis ----
    # Output rows are length C*H*W, so masked partial stores happen only once
    # per batch row instead of once per (b, c) or (b, c, h) slice.
    R, T = B, C * hw
    x2 = img.reshape(R, T)                          # contiguous, free
    rt, lt = _choose_tiles(R, T, itemsize)
    grid = (pl.cdiv(R, rt), pl.cdiv(T, lt))

    mean_vec = jnp.repeat(mean_f32, hw).reshape(1, T)
    inv_vec = jnp.repeat(inv_f32, hw).reshape(1, T)

    out2 = pl.pallas_call(
        _normalize_lane_stats_kernel,
        out_shape=jax.ShapeDtypeStruct((R, T), img.dtype),
        grid=grid,
        in_specs=[
            pl.BlockSpec((1, lt), lambda r, l: (0, l)),   # per-lane mean
            pl.BlockSpec((1, lt), lambda r, l: (0, l)),   # per-lane 1/std
            pl.BlockSpec((rt, lt), lambda r, l: (r, l)),  # image tile
        ],
        out_specs=pl.BlockSpec((rt, lt), lambda r, l: (r, l)),
        compiler_params=compiler_params,
    )(mean_vec, inv_vec, x2)
    return out2.reshape(B, C, H, W)


if __name__ == "__main__":
    key = jax.random.PRNGKey(0)
    k_img, _ = jax.random.split(key)

    B, C, H, W = 2, 4, 16, 16
    img = jax.random.normal(k_img, (B, C, H, W), dtype=jnp.float32)

    # Deterministic "ImageNet-like" per-channel stats (C channels).
    mean = jnp.array([0.485, 0.456, 0.406, 0.5][:C], dtype=jnp.float32)
    std = jnp.array([0.229, 0.224, 0.225, 0.25][:C], dtype=jnp.float32)

    out = normalization(img, mean, std)
    out = jax.block_until_ready(out)

    # Reference check (plain JAX, mirrors the PyTorch broadcast semantics).
    ref = (img - mean.reshape(-1, 1, 1)) / std.reshape(-1, 1, 1)
    assert out.shape == (B, C, H, W)
    assert jnp.allclose(out, ref, atol=1e-6, rtol=1e-6)

    print("KERNEL_OK")
</pallas_src>

<mosaic_0001>
module attributes {stable_mosaic.version = 11 : i64} {
  func.func @_normalize_row_stats_kernel(%arg0: i32, %arg1: i32, %arg2: memref<8x1xf32, #tpu.memory_space<vmem>>, %arg3: memref<8x1xf32, #tpu.memory_space<vmem>>, %arg4: memref<8x256xf32, #tpu.memory_space<vmem>>, %arg5: memref<8x256xf32, #tpu.memory_space<vmem>>) attributes {dimension_semantics = [#tpu.dimension_semantics<parallel>, #tpu.dimension_semantics<parallel>], iteration_bounds = array<i64: 1, 1>, scalar_prefetch = 0 : i64, scratch_operands = 0 : i64, tpu.core_type = #tpu.core_type<tc>, window_params = [{pipeline_mode = #tpu.pipeline_mode<synchronous>, transform_indices = @transform_0, window_bounds = array<i64: 8, 1>}, {pipeline_mode = #tpu.pipeline_mode<synchronous>, transform_indices = @transform_1, window_bounds = array<i64: 8, 1>}, {transform_indices = @transform_2, window_bounds = array<i64: 8, 256>}, {transform_indices = @transform_3, window_bounds = array<i64: 8, 256>}]} {
    %c0 = arith.constant 0 : index
    %c0_0 = arith.constant 0 : index
    %0 = vector.load %arg2[%c0, %c0_0] : memref<8x1xf32, #tpu.memory_space<vmem>>, vector<8x1xf32>
    %c0_1 = arith.constant 0 : index
    %c0_2 = arith.constant 0 : index
    %1 = vector.load %arg3[%c0_1, %c0_2] : memref<8x1xf32, #tpu.memory_space<vmem>>, vector<8x1xf32>
    %c0_3 = arith.constant 0 : index
    %c0_4 = arith.constant 0 : index
    %2 = vector.load %arg4[%c0_3, %c0_4] : memref<8x256xf32, #tpu.memory_space<vmem>>, vector<8x256xf32>
    %3 = vector.broadcast %0 : vector<8x1xf32> to vector<8x256xf32>
    %4 = arith.subf %2, %3 : vector<8x256xf32>
    %5 = vector.broadcast %1 : vector<8x1xf32> to vector<8x256xf32>
    %6 = arith.mulf %4, %5 : vector<8x256xf32>
    %c0_5 = arith.constant 0 : index
    %c0_6 = arith.constant 0 : index
    %7 = vector.load %arg5[%c0_5, %c0_6] : memref<8x256xf32, #tpu.memory_space<vmem>>, vector<8x256xf32>
    tpu.vector_store %arg5[%c0_5, %c0_6], %6 {strides = array<i32>} : memref<8x256xf32, #tpu.memory_space<vmem>>, vector<8x256xf32>,
    return
  }
  func.func @transform_0(%arg0: i32, %arg1: i32) -> (i32, i32) {
    %c0_i32 = arith.constant 0 : i32
    %c0_i32_0 = arith.constant 0 : i32
    %c0_i32_1 = arith.constant 0 : i32
    return %c0_i32, %c0_i32_0 : i32, i32
  }
  func.func @transform_1(%arg0: i32, %arg1: i32) -> (i32, i32) {
    %c0_i32 = arith.constant 0 : i32
    %c0_i32_0 = arith.constant 0 : i32
    %c0_i32_1 = arith.constant 0 : i32
    return %c0_i32, %c0_i32_0 : i32, i32
  }
  func.func @transform_2(%arg0: i32, %arg1: i32) -> (i32, i32) {
    %c0_i32 = arith.constant 0 : i32
    return %arg0, %arg1 : i32, i32
  }
  func.func @transform_3(%arg0: i32, %arg1: i32) -> (i32, i32) {
    %c0_i32 = arith.constant 0 : i32
    return %arg0, %arg1 : i32, i32
  }
}

</mosaic_0001>

<llo_original>
// kernel: tpu_custom_call.1
$region0: #{tpu_custom_call.1}
  #allocation0 [shape = 'u32[]', space=smem, size = 0x4, offset = 0x4, fixed_abs, tag = 'smem constant byte address 0x4 - core index']
  #allocation1 [shape = 'u32[72,128]{1,0:T(1,128)}', space=vmem, size = 0x9000, scoped, tag = 'internal scratch']
  %s0 = inlined_call_operand.vmem [shape: f32[8,1], index: 0, kind: input, shape index: {}]
  %s1 = inlined_call_operand.vmem [shape: f32[8,1], index: 1, kind: input, shape index: {}]
  %s2 = inlined_call_operand.vmem [shape: f32[8,256], index: 2, kind: input, shape index: {}]
  %s3 = inlined_call_operand.hbm [shape: f32[8,256], index: 3, kind: output, shape index: {}]
  %s4 = sld [smem:[#allocation0]]
  $region22: #{tpu_custom_call.1} parent=0
    _
  %s6 = ssub.s32 1, %s4
  %s7 = scalar_select 0, %s6, %s4
  $region1: #{tpu_custom_call.1} parent=0
    #allocation2 [shape = 'u8[8192]{0}', space=vmem, size = 0x2000, scoped, tag = 'output window, operand 0, single buffered']
    #allocation3 [shape = 's32[1]{0}', space=sflag, size = 0x4, scoped, tag = 'scoped memory for tpu_custom_call.1']
    %8 = vsyncpa [#allocation3], 0
    // Predicated region
    $region2: #{tpu_custom_call.1} parent=1 // pred_check
      _
    $region3: #{tpu_custom_call.1} parent=1 // pred_check_branch
      %10 = sbr.rel (0) target = $region5
    $region4: #{tpu_custom_call.1} parent=1 // pred_region
      _
    $region5: #{tpu_custom_call.1} parent=1 // pred_fallthru
      _
    // Predicated region
    $region6: #{tpu_custom_call.1} parent=1 // pred_check
      _
    $region7: #{tpu_custom_call.1} parent=1 // pred_check_branch
      %12 = sbr.rel (0) target = $region9
    $region8: #{tpu_custom_call.1} parent=1 // pred_region
      _
    $region9: #{tpu_custom_call.1} parent=1 // pred_fallthru
      _
    // Predicated region
    $region10: #{tpu_custom_call.1} parent=1 // pred_check
      _
    $region11: #{tpu_custom_call.1} parent=1 // pred_check_branch
      %14 = sbr.rel (0) target = $region13
    $region12: #{tpu_custom_call.1} parent=1 // pred_region
      _
    $region13: #{tpu_custom_call.1} parent=1 // pred_fallthru
      _
    %v15 = vld [vmem:[%s0] sm:$0xff]
    %v16 = vld [vmem:[%s1] sm:$0xff]
    %v17 = vld [vmem:[%s2] sm:$0xff]
    %v18 = vld [vmem:[%s2 + $0x8] sm:$0xff]
    %20 = vset.pattern.permute.xlu0 0
    %21 = vperm.xlu0 %20, %v15
    %v22 = vpop.permute.xlu0 %21
    %v24 = vsub.f32 %v17, %v22
    %v25 = vsub.f32 %v18, %v22
    %27 = vset.pattern.permute.xlu0 0
    %28 = vperm.xlu0 %27, %v16
    %v29 = vpop.permute.xlu0 %28
    %v31 = vmul.f32 %v24, %v29
    %v32 = vmul.f32 %v25, %v29
    %33 = vst [vmem:[#allocation2] sm:$0xff] %v31
    %34 = vst [vmem:[#allocation2 + $0x8] sm:$0xff] %v32
    // Predicated region
    $region14: #{tpu_custom_call.1} parent=1 // pred_check
      _
    $region15: #{tpu_custom_call.1} parent=1 // pred_check_branch
      %36 = sbr.rel (0) target = $region17
    $region16: #{tpu_custom_call.1} parent=1 // pred_region
      %38 = vsyncadd [#allocation3], 0
      %s40 = sshll.u32 [#allocation2], 4
      %s41 = int_to_ptr.vmem [resolvable:$true] %s40
      %s42 = sshll.u32 %s3, 4
      %s43 = int_to_ptr.hbm [resolvable:$true] %s42
      %45 = dma.vmem_to_hbm [thread:$0]  %s41, 256, %s43, [#allocation3]
    $region17: #{tpu_custom_call.1} parent=1 // pred_fallthru
      _
    // Predicated region
    $region18: #{tpu_custom_call.1} parent=1 // pred_check
      _
    $region19: #{tpu_custom_call.1} parent=1 // pred_check_branch
      %47 = sbr.rel (0) target = $region21
    $region20: #{tpu_custom_call.1} parent=1 // pred_region
      %49 = dma.done [#allocation3], 256
    $region21: #{tpu_custom_call.1} parent=1 // pred_fallthru
      _
    %50 = vsyncpa [#allocation3], 1

</llo_original>
